<compile_context>
chip_gen: v7x
topology: tpu7x:2x2x1
jax: 0.10.0
libtpu: 0.0.40
codegen_flags: <defaults>
</compile_context>

<pallas_src>
import functools
import math

import jax
import jax.numpy as jnp
from jax import lax
from jax.experimental import pallas as pl
from jax.experimental.pallas import tpu as pltpu


def _round_up(x: int, m: int) -> int:
    return ((x + m - 1) // m) * m


def _round_down(x: int, m: int) -> int:
    return (x // m) * m


def _ordinal_loss_kernel(*refs, groups: int, n_rows: int):
    # groups == 1:  refs = (pred_ref, thr_ref, out_ref)
    # groups  > 1:  refs = (pred_ref, thr_ref, e_ref, out_ref)   (lane-packed layout)
    if groups > 1:
        pred_ref, thr_ref, e_ref, out_ref = refs
    else:
        pred_ref, thr_ref, out_ref = refs

    b = pl.program_id(0)
    tile_rows, lanes = pred_ref.shape

    # sigmoid(x) - m = 0.5 * (tanh(x/2) + (1 - 2m)); one EUP op (tanh) per element
    # instead of exp + divide. The resulting factor 1/4 is applied in the wrapper.
    t = jnp.tanh(0.5 * pred_ref[...].astype(jnp.float32))

    # Ordinal mask in "sign" form: s = 1 - 2m  (== -1 where class_idx <= target else +1).
    col = lax.broadcasted_iota(jnp.int32, (tile_rows, lanes), 1)
    if groups > 1:
        # thr[r, j] = j*C + target[r*groups + j]. Expand across lanes with a one-hot
        # matmul on the (idle) MXU:  texp[r, f] = thr[r, f // C].
        texp = jnp.dot(thr_ref[...].astype(jnp.float32), e_ref[...],
                       preferred_element_type=jnp.float32)
        cond = col.astype(jnp.float32) <= texp
    else:
        cond = col <= thr_ref[...]                  # (tile_rows, 1) broadcasts over lanes
    s = jnp.where(cond, -1.0, 1.0)

    y = t + s
    sq = y * y                                      # = 4 * (sigmoid(x) - m)^2

    last = pl.num_programs(0) - 1
    if n_rows % tile_rows != 0:
        # Only the last block is ragged: zero its out-of-range rows BEFORE reducing.
        @pl.when(b == last)
        def _ragged():
            row = lax.broadcasted_iota(jnp.int32, (tile_rows, lanes), 0) + b * tile_rows
            out_ref[...] = jnp.sum(jnp.where(row < n_rows, sq, 0.0),
                                   axis=0, keepdims=True)

        @pl.when(b != last)
        def _full():
            out_ref[...] = jnp.sum(sq, axis=0, keepdims=True)
    else:
        out_ref[...] = jnp.sum(sq, axis=0, keepdims=True)


def ordinal_regression_loss(pred: jax.Array, targets: jax.Array, *,
                            max_rows_per_block: int | None = None) -> jax.Array:
    """pred: (N, C) float (any float dtype), targets: (N,) int -> scalar float32 loss."""
    n, c = pred.shape
    targets = targets.astype(jnp.int32)

    # ---- lane-dense packing --------------------------------------------------------
    g = 128 // math.gcd(c, 128)            # smallest g such that g*C is a multiple of 128
    groups = g if (g > 1 and n % g == 0 and n // g >= 8) else 1
    n_rows = n // groups
    lanes = groups * c

    pred2 = pred.reshape(n_rows, lanes)    # row-major bitcast reshape; no data movement
    thr = (targets.reshape(n_rows, groups)
           + jnp.arange(groups, dtype=jnp.int32)[None, :] * c)     # j*C + target
    operands = [pred2, thr]

    # ---- tile sizing: biggest row tile whose VMEM footprint is ~2-8 MiB -------------
    itemsize = jnp.dtype(pred.dtype).itemsize
    row_mult = 16                                       # covers f32 (8,128) and bf16 (16,128)
    vmem_row_bytes = _round_up(lanes, 128) * itemsize   # VMEM tiles are lane-padded

    try:                                                # per-generation VMEM budget
        vmem_cap = int(pltpu.get_tpu_info().vmem_capacity_bytes)
    except Exception:
        vmem_cap = 64 * 1024 * 1024                     # v7x floor; safe everywhere
    vmem_limit = min(vmem_cap * 3 // 4, 96 * 1024 * 1024)   # ~96 MiB v5e/v6e, ~48 MiB v7x

    tile_bytes = min(8 * 1024 * 1024, vmem_limit // 6)  # leaves room for 2x double-buffering
    tile_rows = max(row_mult, _round_down(tile_bytes // vmem_row_bytes, row_mult))
    if max_rows_per_block is not None:
        tile_rows = max(row_mult, _round_down(min(tile_rows, max_rows_per_block), row_mult))
    if tile_rows >= n_rows:
        tile_rows = n_rows                              # single full-extent block, no masking
    nblocks = pl.cdiv(n_rows, tile_rows)

    in_specs = [
        pl.BlockSpec((tile_rows, lanes), lambda b: (b, 0)),    # pred row tile
        pl.BlockSpec((tile_rows, groups), lambda b: (b, 0)),   # per-group thresholds
    ]
    if groups > 1:
        ff = jnp.arange(lanes, dtype=jnp.int32)
        jj = jnp.arange(groups, dtype=jnp.int32)
        e_mat = (ff[None, :] // c == jj[:, None]).astype(jnp.float32)   # (groups, lanes)
        operands.append(e_mat)
        in_specs.append(pl.BlockSpec((groups, lanes), lambda b: (0, 0)))

    cost = pl.CostEstimate(
        flops=8 * n * c,
        transcendentals=n * c,                          # one tanh per element
        bytes_accessed=n * c * itemsize + n * 4 + nblocks * lanes * 4,
    )

    kernel = functools.partial(_ordinal_loss_kernel, groups=groups, n_rows=n_rows)
    partials = pl.pallas_call(
        kernel,
        out_shape=jax.ShapeDtypeStruct((nblocks, lanes), jnp.float32),
        grid=(nblocks,),
        in_specs=in_specs,
        out_specs=pl.BlockSpec((1, lanes), lambda b: (b, 0)),
        compiler_params=pltpu.CompilerParams(
            dimension_semantics=("parallel",),          # independent blocks; v7x megacore shards
            vmem_limit_bytes=vmem_limit,
        ),
        cost_estimate=cost,
    )(*operands)

    # In-kernel partial sums are sum(4*(p - m)^2); undo the 4 and take the batch mean.
    return jnp.sum(partials, dtype=jnp.float32) * (0.25 / n)


def _reference(pred, targets):
    """Pure-JAX reference mirroring the PyTorch module."""
    p = jax.nn.sigmoid(pred.astype(jnp.float32))
    _, c = p.shape
    col = jnp.arange(c)[None, :]
    m = (col <= targets.astype(jnp.int32)[:, None]).astype(jnp.float32)
    return jnp.mean(jnp.sum((p - m) ** 2, axis=1))


if __name__ == "__main__":
    key = jax.random.PRNGKey(0)
    k1, k2, k3, k4, k5, k6 = jax.random.split(key, 6)

    C = 32

    # Case 1: tiny batch, f32 (unpacked fallback path, single full-extent block).
    N1 = 8
    pred1 = jax.random.normal(k1, (N1, C), dtype=jnp.float32)
    tgt1 = jax.random.randint(k2, (N1,), 0, C, dtype=jnp.int32)
    loss1 = jax.block_until_ready(ordinal_regression_loss(pred1, tgt1))
    ref1 = _reference(pred1, tgt1)
    assert jnp.allclose(loss1, ref1, rtol=1e-5, atol=1e-5), (loss1, ref1)

    # Case 2: N not divisible by the packing factor -> unpacked path; forced small
    # blocks so the multi-block + ragged-last-block masking path is exercised.
    N2 = 50
    pred2 = jax.random.normal(k3, (N2, C), dtype=jnp.float32)
    tgt2 = jax.random.randint(k4, (N2,), 0, C, dtype=jnp.int32)
    loss2 = jax.block_until_ready(
        ordinal_regression_loss(pred2, tgt2, max_rows_per_block=16))
    ref2 = _reference(pred2, tgt2)
    assert jnp.allclose(loss2, ref2, rtol=1e-5, atol=1e-5), (loss2, ref2)

    # Case 3: lane-packed path (g=4 -> 18 packed rows) with a ragged last block.
    N3 = 72
    pred3 = jax.random.normal(k5, (N3, C), dtype=jnp.float32)
    tgt3 = jax.random.randint(k6, (N3,), 0, C, dtype=jnp.int32)
    loss3 = jax.block_until_ready(
        ordinal_regression_loss(pred3, tgt3, max_rows_per_block=16))
    ref3 = _reference(pred3, tgt3)
    assert jnp.allclose(loss3, ref3, rtol=1e-5, atol=1e-5), (loss3, ref3)

    # Case 4: bf16 input stays bf16 in HBM (halved bandwidth); f32 math in-kernel.
    pred4 = pred1.astype(jnp.bfloat16)
    loss4 = jax.block_until_ready(ordinal_regression_loss(pred4, tgt1))
    ref4 = _reference(pred4, tgt1)
    assert jnp.allclose(loss4, ref4, rtol=1e-4, atol=1e-4), (loss4, ref4)

    print("KERNEL_OK")
</pallas_src>

<mosaic_0001>
module attributes {stable_mosaic.version = 11 : i64} {
  func.func @_ordinal_loss_kernel(%arg0: i32, %arg1: memref<8x32xf32, #tpu.memory_space<vmem>>, %arg2: memref<8x1xi32, #tpu.memory_space<vmem>>, %arg3: memref<1x32xf32, #tpu.memory_space<vmem>>) attributes {dimension_semantics = [#tpu.dimension_semantics<parallel>], iteration_bounds = array<i64: 1>, scalar_prefetch = 0 : i64, scratch_operands = 0 : i64, tpu.core_type = #tpu.core_type<tc>, window_params = [{transform_indices = @transform_0, window_bounds = array<i64: 8, 32>}, {transform_indices = @transform_1, window_bounds = array<i64: 8, 1>}, {transform_indices = @transform_2, window_bounds = array<i64: 1, 32>}]} {
    %c0 = arith.constant 0 : index
    %c0_0 = arith.constant 0 : index
    %0 = vector.load %arg1[%c0, %c0_0] : memref<8x32xf32, #tpu.memory_space<vmem>>, vector<8x32xf32>
    %cst = arith.constant 5.000000e-01 : f32
    %1 = vector.broadcast %cst : f32 to vector<8x32xf32>
    %2 = arith.mulf %1, %0 : vector<8x32xf32>
    %3 = math.tanh %2 : vector<8x32xf32>
    %4 = tpu.iota {dimensions = array<i32: 1>} : vector<8x32xi32>
    %c0_1 = arith.constant 0 : index
    %c0_2 = arith.constant 0 : index
    %5 = vector.load %arg2[%c0_1, %c0_2] : memref<8x1xi32, #tpu.memory_space<vmem>>, vector<8x1xi32>
    %6 = vector.broadcast %5 : vector<8x1xi32> to vector<8x32xi32>
    %7 = arith.cmpi sle, %4, %6 : vector<8x32xi32>
    %cst_3 = arith.constant -1.000000e+00 : f32
    %cst_4 = arith.constant 1.000000e+00 : f32
    %8 = vector.broadcast %cst_3 : f32 to vector<8x32xf32>
    %9 = vector.broadcast %cst_4 : f32 to vector<8x32xf32>
    %10 = arith.select %7, %8, %9 : vector<8x32xi1>, vector<8x32xf32>
    %11 = arith.addf %3, %10 : vector<8x32xf32>
    %12 = arith.mulf %11, %11 : vector<8x32xf32>
    %cst_5 = arith.constant dense<0.000000e+00> : vector<32xf32>
    %13 = vector.multi_reduction <add>, %12, %cst_5 [0] : vector<8x32xf32> to vector<32xf32>
    %14 = vector.shape_cast %13 : vector<32xf32> to vector<1x32xf32>
    %c0_6 = arith.constant 0 : index
    %c0_7 = arith.constant 0 : index
    %15 = vector.load %arg3[%c0_6, %c0_7] : memref<1x32xf32, #tpu.memory_space<vmem>>, vector<1x32xf32>
    tpu.vector_store %arg3[%c0_6, %c0_7], %14 {strides = array<i32>} : memref<1x32xf32, #tpu.memory_space<vmem>>, vector<1x32xf32>,
    return
  }
  func.func @transform_0(%arg0: i32) -> (i32, i32) {
    %c0_i32 = arith.constant 0 : i32
    %c0_i32_0 = arith.constant 0 : i32
    return %arg0, %c0_i32 : i32, i32
  }
  func.func @transform_1(%arg0: i32) -> (i32, i32) {
    %c0_i32 = arith.constant 0 : i32
    %c0_i32_0 = arith.constant 0 : i32
    return %arg0, %c0_i32 : i32, i32
  }
  func.func @transform_2(%arg0: i32) -> (i32, i32) {
    %c0_i32 = arith.constant 0 : i32
    %c0_i32_0 = arith.constant 0 : i32
    return %arg0, %c0_i32 : i32, i32
  }
}

</mosaic_0001>

<llo_original>
// kernel: tpu_custom_call.1
$region0: #{tpu_custom_call.1}
  #allocation0 [shape = 'u32[]', space=smem, size = 0x4, offset = 0x4, fixed_abs, tag = 'smem constant byte address 0x4 - core index']
  #allocation1 [shape = 'u32[144,128]{1,0:T(1,128)}', space=vmem, size = 0x12000, scoped, tag = 'internal scratch']
  %s0 = inlined_call_operand.vmem [shape: f32[8,32], index: 0, kind: input, shape index: {}]
  %s1 = inlined_call_operand.vmem [shape: s32[8,1], index: 1, kind: input, shape index: {}]
  %s2 = inlined_call_operand.hbm [shape: f32[1,32], index: 2, kind: output, shape index: {}]
  %s3 = sld [smem:[#allocation0]]
  $region18: #{tpu_custom_call.1} parent=0
    _
  %s5 = ssub.s32 1, %s3
  %s6 = scalar_select 0, %s5, %s3
  $region1: #{tpu_custom_call.1} parent=0
    #allocation2 [shape = 'u8[512]{0}', space=vmem, size = 0x400, scoped, tag = 'output window, operand 0, single buffered']
    #allocation3 [shape = 's32[1]{0}', space=sflag, size = 0x4, scoped, tag = 'scoped memory for tpu_custom_call.1']
    %7 = vsyncpa [#allocation3], 0
    // Predicated region
    $region2: #{tpu_custom_call.1} parent=1 // pred_check
      _
    $region3: #{tpu_custom_call.1} parent=1 // pred_check_branch
      %9 = sbr.rel (0) target = $region5
    $region4: #{tpu_custom_call.1} parent=1 // pred_region
      _
    $region5: #{tpu_custom_call.1} parent=1 // pred_fallthru
      _
    // Predicated region
    $region6: #{tpu_custom_call.1} parent=1 // pred_check
      _
    $region7: #{tpu_custom_call.1} parent=1 // pred_check_branch
      %11 = sbr.rel (0) target = $region9
    $region8: #{tpu_custom_call.1} parent=1 // pred_region
      _
    $region9: #{tpu_custom_call.1} parent=1 // pred_fallthru
      _
    %v12 = vld [vmem:[%s0] sm:$0xff]
    %v13 = vmul.f32 %v12, 0.5
    %v14 = vtanh.pop %v13
    %v15 = vlaneseq
    %v16 = vand.u32 %v15, 127
    %v17 = vld [vmem:[%s1] sm:$0xff]
    %18 = vset.pattern.permute.xlu0 0
    %19 = vperm.xlu0 %18, %v17
    %v20 = vpop.permute.xlu0 %19
    %vm21 = vcmp.le.s32.totalorder %v16, %v20
    %v22 = vsel %vm21, -1.0, 1.0
    %v23 = vadd.f32 %v14, %v22
    %v24 = vmul.f32 %v23, %v23
    %vm25 = vcmask 261120
    %v26 = vsel %vm25, %v24, 0.0
    %v27 = vrot.slane %v26, 4
    %v28 = vadd.f32 %v26, %v27
    %v29 = vrot.slane %v28, 2
    %v30 = vadd.f32 %v28, %v29
    %v31 = vrot.slane %v30, 1
    %v32 = vadd.f32 %v30, %v31
    %vm33 = vcmask 253952
    %34 = vst.msk [vmem:[#allocation2] sm:$0x1] %vm33, %v32
    // Predicated region
    $region10: #{tpu_custom_call.1} parent=1 // pred_check
      _
    $region11: #{tpu_custom_call.1} parent=1 // pred_check_branch
      %36 = sbr.rel (0) target = $region13
    $region12: #{tpu_custom_call.1} parent=1 // pred_region
      %s38 = ssub.s32 16, 16
      %39 = vsyncadd [#allocation3], %s38
      %s41 = sshll.u32 [#allocation2], 4
      %s42 = int_to_ptr.vmem [resolvable:$true] %s41
      %44 = dma.vmem_to_hbm [thread:$0]  %s42, 16, %s2, [#allocation3]
    $region13: #{tpu_custom_call.1} parent=1 // pred_fallthru
      _
    // Predicated region
    $region14: #{tpu_custom_call.1} parent=1 // pred_check
      _
    $region15: #{tpu_custom_call.1} parent=1 // pred_check_branch
      %46 = sbr.rel (0) target = $region17
    $region16: #{tpu_custom_call.1} parent=1 // pred_region
      %47 = dma.done [#allocation3], 16
    $region17: #{tpu_custom_call.1} parent=1 // pred_fallthru
      _
    %48 = vsyncpa [#allocation3], 1

</llo_original>
